<compile_context>
chip_gen: v6e
topology: v6e:2x2x1
jax: 0.10.0
libtpu: 0.0.40
codegen_flags: <defaults>
</compile_context>

<pallas_src>
import functools

import jax
import jax.numpy as jnp
from jax.experimental import pallas as pl
from jax.experimental.pallas import tpu as pltpu

LANE = 128  # TPU lane width; packed head output is padded to this many columns.


# --------------------------------------------------------------------------- #
# Kernel
# --------------------------------------------------------------------------- #
def actor_net_kernel(x_ref, w1_ref, b1_ref, w2_ref, b2_ref, wh_ref, bh_ref,
                     lo_ref, hi_ref, out_ref, *, bf16_activations,
                     transpose_out):
    # x tile: (tb, D_in) f32 -> bf16 (in-kernel cast is VPU filler under MXU)
    x = x_ref[...].astype(jnp.bfloat16)

    # layer1 + ReLU (bf16 operands, f32 accumulate on MXU)
    h = jnp.dot(x, w1_ref[...], preferred_element_type=jnp.float32) + b1_ref[...]
    if bf16_activations:                      # v6e/v7x: bf16 VPU -> packed relu
        h = jnp.maximum(h.astype(jnp.bfloat16), 0)
    else:                                     # v2-v5: keep relu in f32
        h = jnp.maximum(h, 0.0).astype(jnp.bfloat16)

    # layer2 + ReLU
    h = jnp.dot(h, w2_ref[...], preferred_element_type=jnp.float32) + b2_ref[...]
    if bf16_activations:
        h = jnp.maximum(h.astype(jnp.bfloat16), 0)
    else:
        h = jnp.maximum(h, 0.0).astype(jnp.bfloat16)

    # packed heads: columns [0, n_actions) = mean, [n_actions, 2*n_actions) = std,
    # remaining columns are zero padding.
    heads = jnp.dot(h, wh_ref[...], preferred_element_type=jnp.float32) + bh_ref[...]

    # per-column lo/hi clip (2 VALU ops): std columns clamp to
    # [reparam_noise, 1.0], all other columns see (-inf, +inf).
    heads = jnp.minimum(jnp.maximum(heads, lo_ref[...]), hi_ref[...])

    if transpose_out:
        # (tb, 128) -> (128, tb) via XLU transpose, keep only the first 8
        # sublanes -> lane-dense (8, tb) store, 16x fewer output bytes.
        out_ref[...] = jnp.transpose(heads)[: out_ref.shape[0], :]
    else:
        # tiny / unaligned batch: lane-dense (tb, 128) store.
        out_ref[...] = heads


# --------------------------------------------------------------------------- #
# One-time parameter preparation (packing + casts) — item 2 of the review.
# --------------------------------------------------------------------------- #
def prepare_actor_params(params, *, n_actions=2, reparam_noise=1e-6):
    """Pack heads, cast matmul operands to bf16 and build clamp vectors ONCE."""
    d_in, fc1 = params["w1"].shape
    fc2 = params["w2"].shape[1]
    assert 2 * n_actions <= LANE, "packed heads must fit in one 128-lane slab"

    wh = jnp.zeros((fc2, LANE), jnp.float32)
    wh = wh.at[:, :n_actions].set(params["w_mean"])
    wh = wh.at[:, n_actions:2 * n_actions].set(params["w_std"])
    bh = jnp.zeros((1, LANE), jnp.float32)
    bh = bh.at[:, :n_actions].set(params["b_mean"].reshape(1, -1))
    bh = bh.at[:, n_actions:2 * n_actions].set(params["b_std"].reshape(1, -1))

    col = jnp.arange(LANE)
    is_std = (col >= n_actions) & (col < 2 * n_actions)
    lo = jnp.where(is_std, reparam_noise, -jnp.inf).astype(jnp.float32).reshape(1, LANE)
    hi = jnp.where(is_std, 1.0, jnp.inf).astype(jnp.float32).reshape(1, LANE)

    return {
        "w1": params["w1"].astype(jnp.bfloat16),
        "b1": params["b1"].reshape(1, fc1).astype(jnp.float32),
        "w2": params["w2"].astype(jnp.bfloat16),
        "b2": params["b2"].reshape(1, fc2).astype(jnp.float32),
        "wh": wh.astype(jnp.bfloat16),
        "bh": bh,
        "lo": lo,
        "hi": hi,
    }


# --------------------------------------------------------------------------- #
# Helpers
# --------------------------------------------------------------------------- #
@functools.lru_cache(maxsize=1)
def _vpu_supports_bf16():
    """v6e/v7x have bf16 VALUs; v2-v5 do not (review: keep relu in f32 there)."""
    try:
        kind = jax.devices()[0].device_kind.lower()
    except Exception:
        return True
    return not any(tag in kind for tag in ("v2", "v3", "v4", "v5"))


def _pick_batch_tile(B):
    """Big tiles to amortize ~0.35us/step grid overhead, but keep >= 2 parallel
    steps for B >= 256 so v7x's two TensorCores both get work."""
    if B % 128 != 0:
        return B                      # tiny / unaligned batch: single step
    if B == 128:
        return 128
    cap = min(1024, B // 2)           # >= 2 steps; <= 1024 keeps VMEM tiny on v7x
    tb = (cap // 128) * 128
    while B % tb != 0:
        tb -= 128
    return max(tb, 128)


# --------------------------------------------------------------------------- #
# Forward wrapper
# --------------------------------------------------------------------------- #
def actor_net_forward(x, prepared, *, n_actions=2, batch_tile=None):
    """x: [B, D_in] float32. prepared: output of prepare_actor_params().

    Returns (mean, std) each [B, n_actions] float32, matching ActorNet.forward.
    """
    B, D_in = x.shape
    fc1 = prepared["w1"].shape[1]
    fc2 = prepared["w2"].shape[1]

    tb = _pick_batch_tile(B) if batch_tile is None else batch_tile
    assert B % tb == 0
    grid = (B // tb,)

    # Transposed lane-dense (8, B) output only when tiles are 128-aligned; the
    # tiny-batch path keeps the proven (B, 128) layout.
    transpose_out = (tb % 128 == 0)
    out_rows = max(8, -(-(2 * n_actions) // 8) * 8)

    in_specs = [
        pl.BlockSpec((tb, D_in), lambda i: (i, 0)),      # x tile (f32)
        pl.BlockSpec((D_in, fc1), lambda i: (0, 0)),     # w1 (resident)
        pl.BlockSpec((1, fc1), lambda i: (0, 0)),        # b1
        pl.BlockSpec((fc1, fc2), lambda i: (0, 0)),      # w2
        pl.BlockSpec((1, fc2), lambda i: (0, 0)),        # b2
        pl.BlockSpec((fc2, LANE), lambda i: (0, 0)),     # packed head weight
        pl.BlockSpec((1, LANE), lambda i: (0, 0)),       # packed head bias
        pl.BlockSpec((1, LANE), lambda i: (0, 0)),       # clamp lo
        pl.BlockSpec((1, LANE), lambda i: (0, 0)),       # clamp hi
    ]
    if transpose_out:
        out_specs = pl.BlockSpec((out_rows, tb), lambda i: (0, i))
        out_shape = jax.ShapeDtypeStruct((out_rows, B), jnp.float32)
        out_bytes = out_rows * B * 4
    else:
        out_specs = pl.BlockSpec((tb, LANE), lambda i: (i, 0))
        out_shape = jax.ShapeDtypeStruct((B, LANE), jnp.float32)
        out_bytes = B * LANE * 4

    flops = 2 * B * (D_in * fc1 + fc1 * fc2 + fc2 * LANE)
    bytes_accessed = (
        B * D_in * 4                                     # x (f32 in)
        + (D_in * fc1 + fc1 * fc2 + fc2 * LANE) * 2      # bf16 weights
        + (fc1 + fc2 + 3 * LANE) * 4                     # biases + lo/hi
        + out_bytes
    )

    kernel = functools.partial(
        actor_net_kernel,
        bf16_activations=_vpu_supports_bf16(),
        transpose_out=transpose_out,
    )

    out = pl.pallas_call(
        kernel,
        out_shape=out_shape,
        grid_spec=pltpu.PrefetchScalarGridSpec(
            num_scalar_prefetch=0,
            grid=grid,
            in_specs=in_specs,
            out_specs=out_specs,
        ),
        compiler_params=pltpu.CompilerParams(
            dimension_semantics=("parallel",),
        ),
        cost_estimate=pl.CostEstimate(
            flops=flops, transcendentals=0, bytes_accessed=bytes_accessed),
    )(x, prepared["w1"], prepared["b1"], prepared["w2"], prepared["b2"],
      prepared["wh"], prepared["bh"], prepared["lo"], prepared["hi"])

    if transpose_out:
        mean = out[:n_actions, :].T
        std = out[n_actions:2 * n_actions, :].T
    else:
        mean = out[:, :n_actions]
        std = out[:, n_actions:2 * n_actions]
    return mean, std


# --------------------------------------------------------------------------- #
# Init + pure-JAX reference (mirrors the bf16-matmul / f32-accumulate numerics)
# --------------------------------------------------------------------------- #
def init_actor_net_params(key, input_dims, fc1_units=256, fc2_units=256,
                          n_actions=2):
    """PyTorch nn.Linear default init: U(-1/sqrt(fan_in), +1/sqrt(fan_in))."""
    ks = jax.random.split(key, 8)

    def uniform(k, shape, fan_in):
        bound = 1.0 / jnp.sqrt(float(fan_in))
        return jax.random.uniform(k, shape, jnp.float32, -bound, bound)

    return {
        # stored as [in, out] (transposed vs. PyTorch's [out, in])
        "w1": uniform(ks[0], (input_dims, fc1_units), input_dims),
        "b1": uniform(ks[1], (fc1_units,), input_dims),
        "w2": uniform(ks[2], (fc1_units, fc2_units), fc1_units),
        "b2": uniform(ks[3], (fc2_units,), fc1_units),
        "w_mean": uniform(ks[4], (fc2_units, n_actions), fc2_units),
        "b_mean": uniform(ks[5], (n_actions,), fc2_units),
        "w_std": uniform(ks[6], (fc2_units, n_actions), fc2_units),
        "b_std": uniform(ks[7], (n_actions,), fc2_units),
    }


def actor_net_reference(x, params, *, reparam_noise=1e-6):
    def bdot(a, w):
        return jnp.dot(a.astype(jnp.bfloat16), w.astype(jnp.bfloat16),
                       preferred_element_type=jnp.float32)

    h1 = jnp.maximum(bdot(x, params["w1"]) + params["b1"][None, :], 0.0)
    h2 = jnp.maximum(bdot(h1, params["w2"]) + params["b2"][None, :], 0.0)
    mean = bdot(h2, params["w_mean"]) + params["b_mean"][None, :]
    std = bdot(h2, params["w_std"]) + params["b_std"][None, :]
    std = jnp.clip(std, reparam_noise, 1.0)
    return mean, std


# TODO(synk): sample_data (Normal rsample/log_prob + tanh squash * max_factor)
# is stochastic host-level logic and is not part of forward(); left to plain JAX.

if __name__ == "__main__":
    key = jax.random.PRNGKey(0)
    k_param, k_x, k_x2 = jax.random.split(key, 3)

    # Small, forward-consistent shapes: state dim 8, hidden 256/256, 2 actions.
    B, D_IN, FC1, FC2, NA = 8, 8, 256, 256, 2

    params = init_actor_net_params(k_param, D_IN, FC1, FC2, NA)
    prepared = prepare_actor_params(params, n_actions=NA, reparam_noise=1e-6)

    # --- tiny-batch path (grid=(1,), (B,128) output layout) ---
    x = jax.random.normal(k_x, (B, D_IN), jnp.float32)
    mean, std = actor_net_forward(x, prepared, n_actions=NA)
    mean = jax.block_until_ready(mean)
    std = jax.block_until_ready(std)

    mean_ref, std_ref = actor_net_reference(x, params)
    assert mean.shape == (B, NA) and std.shape == (B, NA)
    assert jnp.allclose(mean, mean_ref, atol=1e-3, rtol=1e-3)
    assert jnp.allclose(std, std_ref, atol=1e-3, rtol=1e-3)
    assert bool(jnp.all(std >= 1e-6 - 1e-9)) and bool(jnp.all(std <= 1.0 + 1e-9))

    # --- aligned-batch path (grid=(2,), transposed lane-dense (8,B) output) ---
    B2 = 256
    x2 = jax.random.normal(k_x2, (B2, D_IN), jnp.float32)
    mean2, std2 = actor_net_forward(x2, prepared, n_actions=NA)
    mean2 = jax.block_until_ready(mean2)
    std2 = jax.block_until_ready(std2)
    mean2_ref, std2_ref = actor_net_reference(x2, params)
    assert mean2.shape == (B2, NA) and std2.shape == (B2, NA)
    assert jnp.allclose(mean2, mean2_ref, atol=1e-3, rtol=1e-3)
    assert jnp.allclose(std2, std2_ref, atol=1e-3, rtol=1e-3)
    assert bool(jnp.all(std2 >= 1e-6 - 1e-9)) and bool(jnp.all(std2 <= 1.0 + 1e-9))

    print("KERNEL_OK")
</pallas_src>

<mosaic_0001>
module attributes {stable_mosaic.version = 11 : i64} {
  func.func @actor_net_kernel(%arg0: i32, %arg1: memref<8x8xf32, #tpu.memory_space<vmem>>, %arg2: memref<8x256xbf16, #tpu.memory_space<vmem>>, %arg3: memref<1x256xf32, #tpu.memory_space<vmem>>, %arg4: memref<256x256xbf16, #tpu.memory_space<vmem>>, %arg5: memref<1x256xf32, #tpu.memory_space<vmem>>, %arg6: memref<256x128xbf16, #tpu.memory_space<vmem>>, %arg7: memref<1x128xf32, #tpu.memory_space<vmem>>, %arg8: memref<1x128xf32, #tpu.memory_space<vmem>>, %arg9: memref<1x128xf32, #tpu.memory_space<vmem>>, %arg10: memref<8x128xf32, #tpu.memory_space<vmem>>) attributes {dimension_semantics = [#tpu.dimension_semantics<parallel>], iteration_bounds = array<i64: 1>, scalar_prefetch = 0 : i64, scratch_operands = 0 : i64, tpu.core_type = #tpu.core_type<tc>, window_params = [{transform_indices = @transform_0, window_bounds = array<i64: 8, 8>}, {pipeline_mode = #tpu.pipeline_mode<synchronous>, transform_indices = @transform_1, window_bounds = array<i64: 8, 256>}, {pipeline_mode = #tpu.pipeline_mode<synchronous>, transform_indices = @transform_2, window_bounds = array<i64: 1, 256>}, {pipeline_mode = #tpu.pipeline_mode<synchronous>, transform_indices = @transform_3, window_bounds = array<i64: 256, 256>}, {pipeline_mode = #tpu.pipeline_mode<synchronous>, transform_indices = @transform_4, window_bounds = array<i64: 1, 256>}, {pipeline_mode = #tpu.pipeline_mode<synchronous>, transform_indices = @transform_5, window_bounds = array<i64: 256, 128>}, {pipeline_mode = #tpu.pipeline_mode<synchronous>, transform_indices = @transform_6, window_bounds = array<i64: 1, 128>}, {pipeline_mode = #tpu.pipeline_mode<synchronous>, transform_indices = @transform_7, window_bounds = array<i64: 1, 128>}, {pipeline_mode = #tpu.pipeline_mode<synchronous>, transform_indices = @transform_8, window_bounds = array<i64: 1, 128>}, {transform_indices = @transform_9, window_bounds = array<i64: 8, 128>}]} {
    %c0 = arith.constant 0 : index
    %c0_0 = arith.constant 0 : index
    %0 = vector.load %arg1[%c0, %c0_0] : memref<8x8xf32, #tpu.memory_space<vmem>>, vector<8x8xf32>
    %1 = arith.truncf %0 : vector<8x8xf32> to vector<8x8xbf16>
    %c0_1 = arith.constant 0 : index
    %c0_2 = arith.constant 0 : index
    %2 = vector.load %arg2[%c0_1, %c0_2] : memref<8x256xbf16, #tpu.memory_space<vmem>>, vector<8x256xbf16>
    %cst = arith.constant dense<0.000000e+00> : vector<8x256xf32>
    %3 = tpu.matmul %1, %2, %cst {dimension_numbers = #tpu.dot_dimension_numbers<[1], [0], [0], [1], [0, 0, 1, 1], [], []>} : vector<8x8xbf16>, vector<8x256xbf16>, vector<8x256xf32> -> vector<8x256xf32>
    %c0_3 = arith.constant 0 : index
    %c0_4 = arith.constant 0 : index
    %4 = vector.load %arg3[%c0_3, %c0_4] : memref<1x256xf32, #tpu.memory_space<vmem>>, vector<1x256xf32>
    %5 = vector.broadcast %4 : vector<1x256xf32> to vector<8x256xf32>
    %6 = arith.addf %3, %5 : vector<8x256xf32>
    %7 = arith.truncf %6 : vector<8x256xf32> to vector<8x256xbf16>
    %cst_5 = arith.constant 0.000000e+00 : bf16
    %8 = vector.broadcast %cst_5 : bf16 to vector<8x256xbf16>
    %9 = arith.maximumf %7, %8 : vector<8x256xbf16>
    %c0_6 = arith.constant 0 : index
    %c0_7 = arith.constant 0 : index
    %10 = vector.load %arg4[%c0_6, %c0_7] : memref<256x256xbf16, #tpu.memory_space<vmem>>, vector<256x256xbf16>
    %cst_8 = arith.constant dense<0.000000e+00> : vector<8x256xf32>
    %11 = tpu.matmul %9, %10, %cst_8 {dimension_numbers = #tpu.dot_dimension_numbers<[1], [0], [0], [1], [0, 0, 1, 1], [], []>} : vector<8x256xbf16>, vector<256x256xbf16>, vector<8x256xf32> -> vector<8x256xf32>
    %c0_9 = arith.constant 0 : index
    %c0_10 = arith.constant 0 : index
    %12 = vector.load %arg5[%c0_9, %c0_10] : memref<1x256xf32, #tpu.memory_space<vmem>>, vector<1x256xf32>
    %13 = vector.broadcast %12 : vector<1x256xf32> to vector<8x256xf32>
    %14 = arith.addf %11, %13 : vector<8x256xf32>
    %15 = arith.truncf %14 : vector<8x256xf32> to vector<8x256xbf16>
    %cst_11 = arith.constant 0.000000e+00 : bf16
    %16 = vector.broadcast %cst_11 : bf16 to vector<8x256xbf16>
    %17 = arith.maximumf %15, %16 : vector<8x256xbf16>
    %c0_12 = arith.constant 0 : index
    %c0_13 = arith.constant 0 : index
    %18 = vector.load %arg6[%c0_12, %c0_13] : memref<256x128xbf16, #tpu.memory_space<vmem>>, vector<256x128xbf16>
    %cst_14 = arith.constant dense<0.000000e+00> : vector<8x128xf32>
    %19 = tpu.matmul %17, %18, %cst_14 {dimension_numbers = #tpu.dot_dimension_numbers<[1], [0], [0], [1], [0, 0, 1, 1], [], []>} : vector<8x256xbf16>, vector<256x128xbf16>, vector<8x128xf32> -> vector<8x128xf32>
    %c0_15 = arith.constant 0 : index
    %c0_16 = arith.constant 0 : index
    %20 = vector.load %arg7[%c0_15, %c0_16] : memref<1x128xf32, #tpu.memory_space<vmem>>, vector<1x128xf32>
    %21 = vector.broadcast %20 : vector<1x128xf32> to vector<8x128xf32>
    %22 = arith.addf %19, %21 : vector<8x128xf32>
    %c0_17 = arith.constant 0 : index
    %c0_18 = arith.constant 0 : index
    %23 = vector.load %arg8[%c0_17, %c0_18] : memref<1x128xf32, #tpu.memory_space<vmem>>, vector<1x128xf32>
    %24 = vector.broadcast %23 : vector<1x128xf32> to vector<8x128xf32>
    %25 = arith.maximumf %22, %24 : vector<8x128xf32>
    %c0_19 = arith.constant 0 : index
    %c0_20 = arith.constant 0 : index
    %26 = vector.load %arg9[%c0_19, %c0_20] : memref<1x128xf32, #tpu.memory_space<vmem>>, vector<1x128xf32>
    %27 = vector.broadcast %26 : vector<1x128xf32> to vector<8x128xf32>
    %28 = arith.minimumf %25, %27 : vector<8x128xf32>
    %c0_21 = arith.constant 0 : index
    %c0_22 = arith.constant 0 : index
    %29 = vector.load %arg10[%c0_21, %c0_22] : memref<8x128xf32, #tpu.memory_space<vmem>>, vector<8x128xf32>
    tpu.vector_store %arg10[%c0_21, %c0_22], %28 {strides = array<i32>} : memref<8x128xf32, #tpu.memory_space<vmem>>, vector<8x128xf32>,
    return
  }
  func.func @transform_0(%arg0: i32) -> (i32, i32) {
    %c0_i32 = arith.constant 0 : i32
    %c0_i32_0 = arith.constant 0 : i32
    return %arg0, %c0_i32 : i32, i32
  }
  func.func @transform_1(%arg0: i32) -> (i32, i32) {
    %c0_i32 = arith.constant 0 : i32
    %c0_i32_0 = arith.constant 0 : i32
    %c0_i32_1 = arith.constant 0 : i32
    return %c0_i32, %c0_i32_0 : i32, i32
  }
  func.func @transform_2(%arg0: i32) -> (i32, i32) {
    %c0_i32 = arith.constant 0 : i32
    %c0_i32_0 = arith.constant 0 : i32
    %c0_i32_1 = arith.constant 0 : i32
    return %c0_i32, %c0_i32_0 : i32, i32
  }
  func.func @transform_3(%arg0: i32) -> (i32, i32) {
    %c0_i32 = arith.constant 0 : i32
    %c0_i32_0 = arith.constant 0 : i32
    %c0_i32_1 = arith.constant 0 : i32
    return %c0_i32, %c0_i32_0 : i32, i32
  }
  func.func @transform_4(%arg0: i32) -> (i32, i32) {
    %c0_i32 = arith.constant 0 : i32
    %c0_i32_0 = arith.constant 0 : i32
    %c0_i32_1 = arith.constant 0 : i32
    return %c0_i32, %c0_i32_0 : i32, i32
  }
  func.func @transform_5(%arg0: i32) -> (i32, i32) {
    %c0_i32 = arith.constant 0 : i32
    %c0_i32_0 = arith.constant 0 : i32
    %c0_i32_1 = arith.constant 0 : i32
    return %c0_i32, %c0_i32_0 : i32, i32
  }
  func.func @transform_6(%arg0: i32) -> (i32, i32) {
    %c0_i32 = arith.constant 0 : i32
    %c0_i32_0 = arith.constant 0 : i32
    %c0_i32_1 = arith.constant 0 : i32
    return %c0_i32, %c0_i32_0 : i32, i32
  }
  func.func @transform_7(%arg0: i32) -> (i32, i32) {
    %c0_i32 = arith.constant 0 : i32
    %c0_i32_0 = arith.constant 0 : i32
    %c0_i32_1 = arith.constant 0 : i32
    return %c0_i32, %c0_i32_0 : i32, i32
  }
  func.func @transform_8(%arg0: i32) -> (i32, i32) {
    %c0_i32 = arith.constant 0 : i32
    %c0_i32_0 = arith.constant 0 : i32
    %c0_i32_1 = arith.constant 0 : i32
    return %c0_i32, %c0_i32_0 : i32, i32
  }
  func.func @transform_9(%arg0: i32) -> (i32, i32) {
    %c0_i32 = arith.constant 0 : i32
    %c0_i32_0 = arith.constant 0 : i32
    return %arg0, %c0_i32 : i32, i32
  }
}

</mosaic_0001>

<llo_original>
// kernel: tpu_custom_call.1
$region0: #{tpu_custom_call.1}
  #allocation0 [shape = 'u32[]', space=smem, size = 0x4, offset = 0x4, fixed_abs, tag = 'smem constant byte address 0x4 - core index']
  #allocation1 [shape = 'u32[144,128]{1,0:T(1,128)}', space=vmem, size = 0x12000, scoped, tag = 'internal scratch']
  %s0 = inlined_call_operand.hbm [shape: f32[8,8], index: 0, kind: input, shape index: {}]
  %s1 = inlined_call_operand.hbm [shape: bf16[8,256], index: 1, kind: input, shape index: {}]
  %s2 = inlined_call_operand.vmem [shape: f32[1,256], index: 2, kind: input, shape index: {}]
  %s3 = inlined_call_operand.hbm [shape: bf16[256,256], index: 3, kind: input, shape index: {}]
  %s4 = inlined_call_operand.vmem [shape: f32[1,256], index: 4, kind: input, shape index: {}]
  %s5 = inlined_call_operand.hbm [shape: bf16[256,128], index: 5, kind: input, shape index: {}]
  %s6 = inlined_call_operand.vmem [shape: f32[1,128], index: 6, kind: input, shape index: {}]
  %s7 = inlined_call_operand.vmem [shape: f32[1,128], index: 7, kind: input, shape index: {}]
  %s8 = inlined_call_operand.vmem [shape: f32[1,128], index: 8, kind: input, shape index: {}]
  %s9 = inlined_call_operand.hbm [shape: f32[8,128], index: 9, kind: output, shape index: {}]
  %s10 = sld [smem:[#allocation0]]
  $region62: #{tpu_custom_call.1} parent=0
    _
  %s12 = ssub.s32 1, %s10
  %s13 = scalar_select 0, %s12, %s10
  $region1: #{tpu_custom_call.1} parent=0
    #allocation2 [shape = 'u8[4096]{0}', space=vmem, size = 0x1000, scoped, tag = 'input window, operand 0, single buffered']
    #allocation3 [shape = 's32[1]{0}', space=sflag, size = 0x4, scoped, tag = 'scoped memory for tpu_custom_call.1']
    #allocation4 [shape = 's32[1]{0}', space=sflag, size = 0x4, scoped, tag = 'scoped memory for tpu_custom_call.1']
    #allocation5 [shape = 'u8[4096]{0}', space=vmem, size = 0x1000, scoped, tag = 'input window, operand 1, single buffered']
    #allocation6 [shape = 's32[1]{0}', space=sflag, size = 0x4, scoped, tag = 'scoped memory for tpu_custom_call.1']
    #allocation7 [shape = 'u8[131072]{0}', space=vmem, size = 0x20000, scoped, tag = 'input window, operand 3, single buffered']
    #allocation8 [shape = 'u8[65536]{0}', space=vmem, size = 0x10000, scoped, tag = 'input window, operand 5, single buffered']
    #allocation9 [shape = 's32[1]{0}', space=sflag, size = 0x4, scoped, tag = 'scoped memory for tpu_custom_call.1']
    #allocation10 [shape = 'u8[4096]{0}', space=vmem, size = 0x1000, scoped, tag = 'output window, operand 0, single buffered']
    %14 = vsyncpa [#allocation3], 0
    %15 = vsyncpa [#allocation6], 0
    %16 = vsyncpa [#allocation9], 0
    %17 = vsyncpa [#allocation4], 0
    // Predicated region
    $region2: #{tpu_custom_call.1} parent=1 // pred_check
      _
    $region3: #{tpu_custom_call.1} parent=1 // pred_check_branch
      %19 = sbr.rel (0) target = $region5
    $region4: #{tpu_custom_call.1} parent=1 // pred_region
      %s21 = ssub.s32 128, 128
      %22 = vsyncadd [#allocation3], %s21
      %s24 = sshll.u32 [#allocation2], 4
      %s25 = int_to_ptr.vmem [resolvable:$true] %s24
      %27 = dma.hbm_to_vmem [thread:$0]  %s0, 128, %s25, [#allocation3]
    $region5: #{tpu_custom_call.1} parent=1 // pred_fallthru
      _
    // Predicated region
    $region6: #{tpu_custom_call.1} parent=1 // pred_check
      _
    $region7: #{tpu_custom_call.1} parent=1 // pred_check_branch
      %29 = sbr.rel (0) target = $region9
    $region8: #{tpu_custom_call.1} parent=1 // pred_region
      %s31 = ssub.s32 128, 128
      %32 = vsyncadd [#allocation6], %s31
      %s34 = sshll.u32 [#allocation5], 4
      %s35 = int_to_ptr.vmem [resolvable:$true] %s34
      %37 = dma.hbm_to_vmem [thread:$0]  %s1, 128, %s35, [#allocation6]
    $region9: #{tpu_custom_call.1} parent=1 // pred_fallthru
      _
    // Predicated region
    $region10: #{tpu_custom_call.1} parent=1 // pred_check
      _
    $region11: #{tpu_custom_call.1} parent=1 // pred_check_branch
      %39 = sbr.rel (0) target = $region13
    $region12: #{tpu_custom_call.1} parent=1 // pred_region
      _
    $region13: #{tpu_custom_call.1} parent=1 // pred_fallthru
      _
    // Predicated region
    $region14: #{tpu_custom_call.1} parent=1 // pred_check
      _
    $region15: #{tpu_custom_call.1} parent=1 // pred_check_branch
      %41 = sbr.rel (0) target = $region17
    $region16: #{tpu_custom_call.1} parent=1 // pred_region
      %s43 = ssub.s32 4096, 4096
      %44 = vsyncadd [#allocation6], %s43
      %s45 = sshll.u32 [#allocation7], 4
      %s46 = int_to_ptr.vmem [resolvable:$true] %s45
      %51 = dma.hbm_to_vmem [thread:$0]  %s3, 4096, %s46, [#allocation6], 128, 128, 8
    $region17: #{tpu_custom_call.1} parent=1 // pred_fallthru
      _
    // Predicated region
    $region18: #{tpu_custom_call.1} parent=1 // pred_check
      _
    $region19: #{tpu_custom_call.1} parent=1 // pred_check_branch
      %53 = sbr.rel (0) target = $region21
    $region20: #{tpu_custom_call.1} parent=1 // pred_region
      _
    $region21: #{tpu_custom_call.1} parent=1 // pred_fallthru
      _
    // Predicated region
    $region22: #{tpu_custom_call.1} parent=1 // pred_check
      _
    $region23: #{tpu_custom_call.1} parent=1 // pred_check_branch
      %55 = sbr.rel (0) target = $region25
    $region24: #{tpu_custom_call.1} parent=1 // pred_region
      %s57 = ssub.s32 2048, 2048
      %58 = vsyncadd [#allocation9], %s57
      %s59 = sshll.u32 [#allocation8], 4
      %s60 = int_to_ptr.vmem [resolvable:$true] %s59
      %65 = dma.hbm_to_vmem [thread:$0]  %s5, 2048, %s60, [#allocation9], 64, 64, 4
    $region25: #{tpu_custom_call.1} parent=1 // pred_fallthru
      _
    // Predicated region
    $region26: #{tpu_custom_call.1} parent=1 // pred_check
      _
    $region27: #{tpu_custom_call.1} parent=1 // pred_check_branch
      %67 = sbr.rel (0) target = $region29
    $region28: #{tpu_custom_call.1} parent=1 // pred_region
      _
    $region29: #{tpu_custom_call.1} parent=1 // pred_fallthru
      _
    // Predicated region
    $region30: #{tpu_custom_call.1} parent=1 // pred_check
      _
    $region31: #{tpu_custom_call.1} parent=1 // pred_check_branch
      %69 = sbr.rel (0) target = $region33
    $region32: #{tpu_custom_call.1} parent=1 // pred_region
      _
    $region33: #{tpu_custom_call.1} parent=1 // pred_fallthru
      _
    // Predicated region
    $region34: #{tpu_custom_call.1} parent=1 // pred_check
      _
    $region35: #{tpu_custom_call.1} parent=1 // pred_check_branch
      %71 = sbr.rel (0) target = $region37
    $region36: #{tpu_custom_call.1} parent=1 // pred_region
      _
    $region37: #{tpu_custom_call.1} parent=1 // pred_fallthru
      _
    // Predicated region
    $region38: #{tpu_custom_call.1} parent=1 // pred_check
      _
    $region39: #{tpu_custom_call.1} parent=1 // pred_check_branch
      %73 = sbr.rel (0) target = $region41
    $region40: #{tpu_custom_call.1} parent=1 // pred_region
      %74 = dma.done [#allocation3], 128
    $region41: #{tpu_custom_call.1} parent=1 // pred_fallthru
      _
    // Predicated region
    $region42: #{tpu_custom_call.1} parent=1 // pred_check
      _
    $region43: #{tpu_custom_call.1} parent=1 // pred_check_branch
      %76 = sbr.rel (0) target = $region45
    $region44: #{tpu_custom_call.1} parent=1 // pred_region
      %77 = dma.done [#allocation6], 128
    $region45: #{tpu_custom_call.1} parent=1 // pred_fallthru
      _
    // Predicated region
    $region46: #{tpu_custom_call.1} parent=1 // pred_check
      _
    $region47: #{tpu_custom_call.1} parent=1 // pred_check_branch
      %79 = sbr.rel (0) target = $region49
    $region48: #{tpu_custom_call.1} parent=1 // pred_region
      %80 = dma.done [#allocation6], 4096
    $region49: #{tpu_custom_call.1} parent=1 // pred_fallthru
      _
    // Predicated region
    $region50: #{tpu_custom_call.1} parent=1 // pred_check
      _
    $region51: #{tpu_custom_call.1} parent=1 // pred_check_branch
      %82 = sbr.rel (0) target = $region53
    $region52: #{tpu_custom_call.1} parent=1 // pred_region
      %83 = dma.done [#allocation9], 2048
    $region53: #{tpu_custom_call.1} parent=1 // pred_fallthru
      _
    %v85 = vld [vmem:[#allocation2] sm:$0xff]
    %v86 = vpack.c.bf16 %v85, %v85
    %v87 = vld [vmem:[#allocation5] sm:$0xff]
    %v88 = vld [vmem:[%s2] sm:$0x3]
    %v90 = vlaneseq
    %v91 = vshrl.u32 %v90, 7
    %v92 = vsub.s32 0, %v91
    %v93 = vrot.slane %v88, %v92
    %v94 = vlaneseq
    %v95 = vshrl.u32 %v94, 7
    %v96 = vsub.s32 1, %v95
    %v97 = vrot.slane %v88, %v96
    %v101 = vunpack.c.l.b16 %v87
    %v102 = vunpack.c.h.b16 %v87
    %v103 = vpack.c.b16 %v101, %v101
    %v104 = vpack.c.b16 %v102, %v102
    %vm105 = vcmask 64512
    %v107 = vsel %vm105, %v86, 0
    %vm109 = vcmask 1043456
    %v111 = vsel %vm109, %v103, 0
    %v114 = vsel %vm109, %v104, 0
    %116 = vmatprep.subr.bf16.mxu0 0
    %117 = vmatpush1.bf16.msra.mxu0 0
    %118 = vmatprep.subr.bf16.mxu0 0
    %119 = vmatpush1.bf16.msra.mxu0 0
    %120 = vmatprep.subr.bf16.mxu0 0
    %121 = vmatpush1.bf16.msra.mxu0 0
    %122 = vmatprep.subr.bf16.mxu0 0
    %123 = vmatpush1.bf16.msra.mxu0 0
    %124 = vmatprep.subr.bf16.mxu0 0
    %125 = vmatpush1.bf16.msra.mxu0 0
    %126 = vmatprep.subr.bf16.mxu0 0
    %127 = vmatpush1.bf16.msra.mxu0 0
    %128 = vmatprep.subr.bf16.mxu0 0
    %129 = vmatpush1.bf16.msra.mxu0 0
    %130 = vmatprep.subr.bf16.mxu0 %v114
    %131 = vmatpush1.bf16.msra.mxu0 %v111
    %132 = vmatprep.subr.bf16.mxu0 0
    %133 = vmatpush2.bf16.msra.mxu0 0
    %134 = vmatprep.subr.bf16.mxu0 0
    %135 = vmatpush2.bf16.msra.mxu0 0
    %136 = vmatprep.subr.bf16.mxu0 0
    %137 = vmatpush2.bf16.msra.mxu0 0
    %138 = vmatprep.subr.bf16.mxu0 0
    %139 = vmatpush2.bf16.msra.mxu0 0
    %140 = vmatprep.subr.bf16.mxu0 0
    %141 = vmatpush2.bf16.msra.mxu0 0
    %142 = vmatprep.subr.bf16.mxu0 0
    %143 = vmatpush2.bf16.msra.mxu0 0
    %144 = vmatprep.subr.bf16.mxu0 0
    %145 = vmatpush2.bf16.msra.mxu0 0
    %146 = vmatprep.subr.bf16.mxu0 0
    %147 = vmatpush2.bf16.msra.mxu0 0
    %148 = vmatprep.mubr.bf16.mxu0 0
    %149 = vmatmul.mubr.bf16.gmra.mxu0 %v107
    %v150 = vpop.f32.mrf.mxu0
    %v151 = vadd.f32 %v93, %v150
    %v152 = vpop.f32.mrf.mxu0
    %v153 = vadd.f32 %v97, %v152
    %v154 = vpop.f32.mrf.mxu0
    %v155 = vpop.f32.mrf.mxu0
    %156 = vdwg.mxu0
    %v157 = vpack.c.bf16 %v151, %v151
    %v158 = vpack.c.bf16 %v153, %v153
    %v159 = vmax.bf16 %v157, 0
    %v160 = vmax.bf16 %v158, 0
    %v161 = vld [vmem:[#allocation7] sm:$0xff]
    %v162 = vld [vmem:[#allocation7 + $0x8] sm:$0xff]
    %v163 = vld [vmem:[#allocation7 + $0x10] sm:$0xff]
    %v164 = vld [vmem:[#allocation7 + $0x18] sm:$0xff]
    %v165 = vld [vmem:[#allocation7 + $0x20] sm:$0xff]
    %v166 = vld [vmem:[#allocation7 + $0x28] sm:$0xff]
    %v167 = vld [vmem:[#allocation7 + $0x30] sm:$0xff]
    %v168 = vld [vmem:[#allocation7 + $0x38] sm:$0xff]
    %v169 = vld [vmem:[#allocation7 + $0x40] sm:$0xff]
    %v170 = vld [vmem:[#allocation7 + $0x48] sm:$0xff]
    %v171 = vld [vmem:[#allocation7 + $0x50] sm:$0xff]
    %v172 = vld [vmem:[#allocation7 + $0x58] sm:$0xff]
    %v173 = vld [vmem:[#allocation7 + $0x60] sm:$0xff]
    %v174 = vld [vmem:[#allocation7 + $0x68] sm:$0xff]
    %v175 = vld [vmem:[#allocation7 + $0x70] sm:$0xff]
    %v176 = vld [vmem:[#allocation7 + $0x78] sm:$0xff]
    %v177 = vld [vmem:[#allocation7 + $0x80] sm:$0xff]
    %v178 = vld [vmem:[#allocation7 + $0x88] sm:$0xff]
    %v179 = vld [vmem:[#allocation7 + $0x90] sm:$0xff]
    %v180 = vld [vmem:[#allocation7 + $0x98] sm:$0xff]
    %v181 = vld [vmem:[#allocation7 + $0xa0] sm:$0xff]
    %v182 = vld [vmem:[#allocation7 + $0xa8] sm:$0xff]
    %v183 = vld [vmem:[#allocation7 + $0xb0] sm:$0xff]
    %v184 = vld [vmem:[#allocation7 + $0xb8] sm:$0xff]
    %v185 = vld [vmem:[#allocation7 + $0xc0] sm:$0xff]
    %v186 = vld [vmem:[#allocation7 + $0xc8] sm:$0xff]
    %v187 = vld [vmem:[#allocation7 + $0xd0] sm:$0xff]
    %v188 = vld [vmem:[#allocation7 + $0xd8] sm:$0xff]
    %v189 = vld [vmem:[#allocation7 + $0xe0] sm:$0xff]
    %v190 = vld [vmem:[#allocation7 + $0xe8] sm:$0xff]
    %v191 = vld [vmem:[#allocation7 + $0xf0] sm:$0xff]
    %v192 = vld [vmem:[#allocation7 + $0xf8] sm:$0xff]
    %v193 = vld [vmem:[%s4] sm:$0x3]
    %v195 = vlaneseq
    %v196 = vshrl.u32 %v195, 7
    %v197 = vsub.s32 0, %v196
    %v198 = vrot.slane %v193, %v197
    %v199 = vlaneseq
    %v200 = vshrl.u32 %v199, 7
    %v201 = vsub.s32 1, %v200
    %v202 = vrot.slane %v193, %v201
    %v237 = vunpack.c.l.b16 %v161
    %v238 = vunpack.c.h.b16 %v161
    %v239 = vunpack.c.l.b16 %v162
    %v240 = vunpack.c.h.b16 %v162
    %v241 = vunpack.c.l.b16 %v163
    %v242 = vunpack.c.h.b16 %v163
    %v243 = vunpack.c.l.b16 %v164
    %v244 = vunpack.c.h.b16 %v164
    %v245 = vunpack.c.l.b16 %v165
    %v246 = vunpack.c.h.b16 %v165
    %v247 = vunpack.c.l.b16 %v166
    %v248 = vunpack.c.h.b16 %v166
    %v249 = vunpack.c.l.b16 %v167
    %v250 = vunpack.c.h.b16 %v167
    %v251 = vunpack.c.l.b16 %v168
    %v252 = vunpack.c.h.b16 %v168
    %v253 = vunpack.c.l.b16 %v169
    %v254 = vunpack.c.h.b16 %v169
    %v255 = vunpack.c.l.b16 %v170
    %v256 = vunpack.c.h.b16 %v170
    %v257 = vunpack.c.l.b16 %v171
    %v258 = vunpack.c.h.b16 %v171
    %v259 = vunpack.c.l.b16 %v172
    %v260 = vunpack.c.h.b16 %v172
    %v261 = vunpack.c.l.b16 %v173
    %v262 = vunpack.c.h.b16 %v173
    %v263 = vunpack.c.l.b16 %v174
    %v264 = vunpack.c.h.b16 %v174
    %v265 = vunpack.c.l.b16 %v175
    %v266 = vunpack.c.h.b16 %v175
    %v267 = vunpack.c.l.b16 %v176
    %v268 = vunpack.c.h.b16 %v176
    %v269 = vunpack.c.l.b16 %v177
    %v270 = vunpack.c.h.b16 %v177
    %v271 = vunpack.c.l.b16 %v178
    %v272 = vunpack.c.h.b16 %v178
    %v273 = vunpack.c.l.b16 %v179
    %v274 = vunpack.c.h.b16 %v179
    %v275 = vunpack.c.l.b16 %v180
    %v276 = vunpack.c.h.b16 %v180
    %v277 = vunpack.c.l.b16 %v181
    %v278 = vunpack.c.h.b16 %v181
    %v279 = vunpack.c.l.b16 %v182
    %v280 = vunpack.c.h.b16 %v182
    %v281 = vunpack.c.l.b16 %v183
    %v282 = vunpack.c.h.b16 %v183
    %v283 = vunpack.c.l.b16 %v184
    %v284 = vunpack.c.h.b16 %v184
    %v285 = vunpack.c.l.b16 %v185
    %v286 = vunpack.c.h.b16 %v185
    %v287 = vunpack.c.l.b16 %v186
    %v288 = vunpack.c.h.b16 %v186
    %v289 = vunpack.c.l.b16 %v187
    %v290 = vunpack.c.h.b16 %v187
    %v291 = vunpack.c.l.b16 %v188
    %v292 = vunpack.c.h.b16 %v188
    %v293 = vunpack.c.l.b16 %v189
    %v294 = vunpack.c.h.b16 %v189
    %v295 = vunpack.c.l.b16 %v190
    %v296 = vunpack.c.h.b16 %v190
    %v297 = vunpack.c.l.b16 %v191
    %v298 = vunpack.c.h.b16 %v191
    %v299 = vunpack.c.l.b16 %v192
    %v300 = vunpack.c.h.b16 %v192
    %v301 = vpack.c.b16 %v239, %v237
    %v302 = vpack.c.b16 %v240, %v238
    %v303 = vpack.c.b16 %v243, %v241
    %v304 = vpack.c.b16 %v244, %v242
    %v305 = vpack.c.b16 %v247, %v245
    %v306 = vpack.c.b16 %v248, %v246
    %v307 = vpack.c.b16 %v251, %v249
    %v308 = vpack.c.b16 %v252, %v250
    %v309 = vpack.c.b16 %v255, %v253
    %v310 = vpack.c.b16 %v256, %v254
    %v311 = vpack.c.b16 %v259, %v257
    %v312 = vpack.c.b16 %v260, %v258
    %v313 = vpack.c.b16 %v263, %v261
    %v314 = vpack.c.b16 %v264, %v262
    %v315 = vpack.c.b16 %v267, %v265
    %v316 = vpack.c.b16 %v268, %v266
    %v317 = vpack.c.b16 %v271, %v269
    %v318 = vpack.c.b16 %v272, %v270
    %v319 = vpack.c.b16 %v275, %v273
    %v320 = vpack.c.b16 %v276, %v274
    %v321 = vpack.c.b16 %v279, %v277
    %v322 = vpack.c.b16 %v280, %v278
    %v323 = vpack.c.b16 %v283, %v281
    %v324 = vpack.c.b16 %v284, %v282
    %v325 = vpack.c.b16 %v287, %v285
    %v326 = vpack.c.b16 %v288, %v286
    %v327 = vpack.c.b16 %v291, %v289
    %v328 = vpack.c.b16 %v292, %v290
    %v329 = vpack.c.b16 %v295, %v293
    %v330 = vpack.c.b16 %v296, %v294
    %v331 = vpack.c.b16 %v299, %v297
    %v332 = vpack.c.b16 %v300, %v298
    %365 = vmatprep.subr.bf16.mxu0 %v316
    %366 = vmatpush1.bf16.msra.mxu0 %v315
    %367 = vmatprep.subr.bf16.mxu0 %v314
    %368 = vmatpush1.bf16.msra.mxu0 %v313
    %369 = vmatprep.subr.bf16.mxu0 %v312
    %370 = vmatpush1.bf16.msra.mxu0 %v311
    %371 = vmatprep.subr.bf16.mxu0 %v310
    %372 = vmatpush1.bf16.msra.mxu0 %v309
    %373 = vmatprep.subr.bf16.mxu0 %v308
    %374 = vmatpush1.bf16.msra.mxu0 %v307
    %375 = vmatprep.subr.bf16.mxu0 %v306
    %376 = vmatpush1.bf16.msra.mxu0 %v305
    %377 = vmatprep.subr.bf16.mxu0 %v304
    %378 = vmatpush1.bf16.msra.mxu0 %v303
    %379 = vmatprep.subr.bf16.mxu0 %v302
    %380 = vmatpush1.bf16.msra.mxu0 %v301
    %381 = vmatprep.subr.bf16.mxu0 %v332
    %382 = vmatpush2.bf16.msra.mxu0 %v331
    %383 = vmatprep.subr.bf16.mxu0 %v330
    %384 = vmatpush2.bf16.msra.mxu0 %v329
    %385 = vmatprep.subr.bf16.mxu0 %v328
    %386 = vmatpush2.bf16.msra.mxu0 %v327
    %387 = vmatprep.subr.bf16.mxu0 %v326
    %388 = vmatpush2.bf16.msra.mxu0 %v325
    %389 = vmatprep.subr.bf16.mxu0 %v324
    %390 = vmatpush2.bf16.msra.mxu0 %v323
    %391 = vmatprep.subr.bf16.mxu0 %v322
    %392 = vmatpush2.bf16.msra.mxu0 %v321
    %393 = vmatprep.subr.bf16.mxu0 %v320
    %394 = vmatpush2.bf16.msra.mxu0 %v319
    %395 = vmatprep.subr.bf16.mxu0 %v318
    %396 = vmatpush2.bf16.msra.mxu0 %v317
    %397 = vmatprep.mubr.bf16.mxu0 %v160
    %398 = vmatmul.mubr.bf16.gmra.mxu0 %v159
    %v399 = vpop.f32.mrf.mxu0
    %v400 = vadd.f32 %v198, %v399
    %v401 = vpop.f32.mrf.mxu0
    %v402 = vadd.f32 %v202, %v401
    %v403 = vpop.f32.mrf.mxu0
    %v404 = vpop.f32.mrf.mxu0
    %405 = vdwg.mxu0
    %v406 = vpack.c.bf16 %v400, %v400
    %v407 = vpack.c.bf16 %v402, %v402
    %v408 = vmax.bf16 %v406, 0
    %v409 = vmax.bf16 %v407, 0
    %v410 = vld [vmem:[#allocation8] sm:$0xf]
    %v411 = vld [vmem:[#allocation8 + $0x4] sm:$0xf]
    %v412 = vld [vmem:[#allocation8 + $0x8] sm:$0xf]
    %v413 = vld [vmem:[#allocation8 + $0xc] sm:$0xf]
    %v414 = vld [vmem:[#allocation8 + $0x10] sm:$0xf]
    %v415 = vld [vmem:[#allocation8 + $0x14] sm:$0xf]
    %v416 = vld [vmem:[#allocation8 + $0x18] sm:$0xf]
    %v417 = vld [vmem:[#allocation8 + $0x1c] sm:$0xf]
    %v418 = vld [vmem:[#allocation8 + $0x20] sm:$0xf]
    %v419 = vld [vmem:[#allocation8 + $0x24] sm:$0xf]
    %v420 = vld [vmem:[#allocation8 + $0x28] sm:$0xf]
    %v421 = vld [vmem:[#allocation8 + $0x2c] sm:$0xf]
    %v422 = vld [vmem:[#allocation8 + $0x30] sm:$0xf]
    %v423 = vld [vmem:[#allocation8 + $0x34] sm:$0xf]
    %v424 = vld [vmem:[#allocation8 + $0x38] sm:$0xf]
    %v425 = vld [vmem:[#allocation8 + $0x3c] sm:$0xf]
    %v426 = vld [vmem:[#allocation8 + $0x40] sm:$0xf]
    %v427 = vld [vmem:[#allocation8 + $0x44] sm:$0xf]
    %v428 = vld [vmem:[#allocation8 + $0x48] sm:$0xf]
    %v429 = vld [vmem:[#allocation8 + $0x4c] sm:$0xf]
    %v430 = vld [vmem:[#allocation8 + $0x50] sm:$0xf]
    %v431 = vld [vmem:[#allocation8 + $0x54] sm:$0xf]
    %v432 = vld [vmem:[#allocation8 + $0x58] sm:$0xf]
    %v433 = vld [vmem:[#allocation8 + $0x5c] sm:$0xf]
    %v434 = vld [vmem:[#allocation8 + $0x60] sm:$0xf]
    %v435 = vld [vmem:[#allocation8 + $0x64] sm:$0xf]
    %v436 = vld [vmem:[#allocation8 + $0x68] sm:$0xf]
    %v437 = vld [vmem:[#allocation8 + $0x6c] sm:$0xf]
    %v438 = vld [vmem:[#allocation8 + $0x70] sm:$0xf]
    %v439 = vld [vmem:[#allocation8 + $0x74] sm:$0xf]
    %v440 = vld [vmem:[#allocation8 + $0x78] sm:$0xf]
    %v441 = vld [vmem:[#allocation8 + $0x7c] sm:$0xf]
    %v442 = vld [vmem:[%s6] sm:$0x1]
    %v444 = vlaneseq
    %v445 = vshrl.u32 %v444, 7
    %v446 = vsub.s32 0, %v445
    %v447 = vrot.slane %v442, %v446
    %v481 = vunpack.c.l.b16 %v410
    %v482 = vunpack.c.l.b16 %v411
    %v483 = vunpack.c.l.b16 %v412
    %v484 = vunpack.c.l.b16 %v413
    %v485 = vunpack.c.l.b16 %v414
    %v486 = vunpack.c.l.b16 %v415
    %v487 = vunpack.c.l.b16 %v416
    %v488 = vunpack.c.l.b16 %v417
    %v489 = vunpack.c.l.b16 %v418
    %v490 = vunpack.c.l.b16 %v419
    %v491 = vunpack.c.l.b16 %v420
    %v492 = vunpack.c.l.b16 %v421
    %v493 = vunpack.c.l.b16 %v422
    %v494 = vunpack.c.l.b16 %v423
    %v495 = vunpack.c.l.b16 %v424
    %v496 = vunpack.c.l.b16 %v425
    %v497 = vunpack.c.l.b16 %v426
    %v498 = vunpack.c.l.b16 %v427
    %v499 = vunpack.c.l.b16 %v428
    %v500 = vunpack.c.l.b16 %v429
    %v501 = vunpack.c.l.b16 %v430
    %v502 = vunpack.c.l.b16 %v431
    %v503 = vunpack.c.l.b16 %v432
    %v504 = vunpack.c.l.b16 %v433
    %v505 = vunpack.c.l.b16 %v434
    %v506 = vunpack.c.l.b16 %v435
    %v507 = vunpack.c.l.b16 %v436
    %v508 = vunpack.c.l.b16 %v437
    %v509 = vunpack.c.l.b16 %v438
    %v510 = vunpack.c.l.b16 %v439
    %v511 = vunpack.c.l.b16 %v440
    %v512 = vunpack.c.l.b16 %v441
    %v513 = vpack.c.b16 %v482, %v481
    %v514 = vpack.c.b16 %v484, %v483
    %v515 = vpack.c.b16 %v486, %v485
    %v516 = vpack.c.b16 %v488, %v487
    %v517 = vpack.c.b16 %v490, %v489
    %v518 = vpack.c.b16 %v492, %v491
    %v519 = vpack.c.b16 %v494, %v493
    %v520 = vpack.c.b16 %v496, %v495
    %v521 = vpack.c.b16 %v498, %v497
    %v522 = vpack.c.b16 %v500, %v499
    %v523 = vpack.c.b16 %v502, %v501
    %v524 = vpack.c.b16 %v504, %v503
    %v525 = vpack.c.b16 %v506, %v505
    %v526 = vpack.c.b16 %v508, %v507
    %v527 = vpack.c.b16 %v510, %v509
    %v528 = vpack.c.b16 %v512, %v511
    %545 = vmatprep.subr.bf16.mxu0 0
    %546 = vmatpush1.bf16.msra.mxu0 %v520
    %547 = vmatprep.subr.bf16.mxu0 0
    %548 = vmatpush1.bf16.msra.mxu0 %v519
    %549 = vmatprep.subr.bf16.mxu0 0
    %550 = vmatpush1.bf16.msra.mxu0 %v518
    %551 = vmatprep.subr.bf16.mxu0 0
    %552 = vmatpush1.bf16.msra.mxu0 %v517
    %553 = vmatprep.subr.bf16.mxu0 0
    %554 = vmatpush1.bf16.msra.mxu0 %v516
    %555 = vmatprep.subr.bf16.mxu0 0
    %556 = vmatpush1.bf16.msra.mxu0 %v515
    %557 = vmatprep.subr.bf16.mxu0 0
    %558 = vmatpush1.bf16.msra.mxu0 %v514
    %559 = vmatprep.subr.bf16.mxu0 0
    %560 = vmatpush1.bf16.msra.mxu0 %v513
    %561 = vmatprep.subr.bf16.mxu0 0
    %562 = vmatpush2.bf16.msra.mxu0 %v528
    %563 = vmatprep.subr.bf16.mxu0 0
    %564 = vmatpush2.bf16.msra.mxu0 %v527
    %565 = vmatprep.subr.bf16.mxu0 0
    %566 = vmatpush2.bf16.msra.mxu0 %v526
    %567 = vmatprep.subr.bf16.mxu0 0
    %568 = vmatpush2.bf16.msra.mxu0 %v525
    %569 = vmatprep.subr.bf16.mxu0 0
    %570 = vmatpush2.bf16.msra.mxu0 %v524
    %571 = vmatprep.subr.bf16.mxu0 0
    %572 = vmatpush2.bf16.msra.mxu0 %v523
    %573 = vmatprep.subr.bf16.mxu0 0
    %574 = vmatpush2.bf16.msra.mxu0 %v522
    %575 = vmatprep.subr.bf16.mxu0 0
    %576 = vmatpush2.bf16.msra.mxu0 %v521
    %577 = vmatprep.mubr.bf16.mxu0 %v409
    %578 = vmatmul.mubr.bf16.gmra.mxu0 %v408
    %v579 = vpop.f32.mrf.mxu0
    %v580 = vadd.f32 %v447, %v579
    %v581 = vpop.f32.mrf.mxu0
    %v582 = vpop.f32.mrf.mxu0
    %v583 = vpop.f32.mrf.mxu0
    %584 = vdwg.mxu0
    %v585 = vld [vmem:[%s7] sm:$0x1]
    %v587 = vlaneseq
    %v588 = vshrl.u32 %v587, 7
    %v589 = vsub.s32 0, %v588
    %v590 = vrot.slane %v585, %v589
    %v592 = vmax.f32 %v580, %v590
    %v593 = vld [vmem:[%s8] sm:$0x1]
    %v595 = vlaneseq
    %v596 = vshrl.u32 %v595, 7
    %v597 = vsub.s32 0, %v596
    %v598 = vrot.slane %v593, %v597
    %v600 = vmin.f32 %v592, %v598
    %601 = vst [vmem:[#allocation10] sm:$0xff] %v600
    // Predicated region
    $region54: #{tpu_custom_call.1} parent=1 // pred_check
      _
    $region55: #{tpu_custom_call.1} parent=1 // pred_check_branch
      %603 = sbr.rel (0) target = $region57
    $region56: #{tpu_custom_call.1} parent=1 // pred_region
      %s605 = ssub.s32 128, 128
      %606 = vsyncadd [#allocation4], %s605
      %s608 = sshll.u32 [#allocation10], 4
      %s609 = int_to_ptr.vmem [resolvable:$true] %s608
      %611 = dma.vmem_to_hbm [thread:$0]  %s609, 128, %s9, [#allocation4]
    $region57: #{tpu_custom_call.1} parent=1 // pred_fallthru
      _
    // Predicated region
    $region58: #{tpu_custom_call.1} parent=1 // pred_check
      _
    $region59: #{tpu_custom_call.1} parent=1 // pred_check_branch
      %613 = sbr.rel (0) target = $region61
    $region60: #{tpu_custom_call.1} parent=1 // pred_region
      %614 = dma.done [#allocation4], 128
    $region61: #{tpu_custom_call.1} parent=1 // pred_fallthru
      _
    %615 = vsyncpa [#allocation3], 1
    %616 = vsyncpa [#allocation6], 1
    %617 = vsyncpa [#allocation9], 1
    %618 = vsyncpa [#allocation4], 1

</llo_original>
